<compile_context>
chip_gen: v7x
topology: tpu7x:2x2x1
jax: 0.10.0
libtpu: 0.0.40
codegen_flags: <defaults>
</compile_context>

<pallas_src>
import functools

import jax
import jax.numpy as jnp
import numpy as np
from jax import lax
from jax.experimental import pallas as pl
from jax.experimental.pallas import tpu as pltpu

N_PAD = 128   # padded node count (lane axis)
E_PAD = 128   # padded edge count (lane axis)
G_PAD = 128   # padded graph count (lane axis)

# dot_general dimension numbers: contract rhs on its LAST dim ("NT" matmul).
_NT = (((1,), (1,)), ((), ()))


def gmodule_kernel(p_ref, sd_row_ref, gid_row_ref, nf_ref, ef_ref, out_ref):
    # scalar parameters from SMEM
    we_s = p_ref[0]
    we_d = p_ref[1]
    we_f = p_ref[2]
    be = p_ref[3]
    wn_h = p_ref[4]
    wn_a = p_ref[5]
    bn = p_ref[6]
    wm = p_ref[7]
    bm = p_ref[8]

    nf = nf_ref[...]          # [1, N_PAD]
    ef = ef_ref[...]          # [1, E_PAD]

    # --- fused src/dst gather: one one-hot, one MXU dot ------------------
    # M_sd[v, e]        = 1 iff src[e] == v   (lanes [0, E_PAD))
    # M_sd[v, E_PAD+e]  = 1 iff dst[e] == v   (lanes [E_PAD, 2*E_PAD))
    # Padded entries are -1 -> all-zero columns -> contribute nothing.
    v_sub = lax.broadcasted_iota(jnp.int32, (N_PAD, 2 * E_PAD), 0)
    m_sd = (v_sub == sd_row_ref[...]).astype(jnp.float32)            # [N, 2E]
    h_sd = jnp.dot(nf, m_sd, preferred_element_type=jnp.float32)     # [1, 2E] (MXU)
    hs = h_sd[:, :E_PAD]                                             # nf[src]
    hd = h_sd[:, E_PAD:]                                             # nf[dst]

    # edge message MLP (VPU elementwise)
    msg = jnp.maximum(we_s * hs + we_d * hd + we_f * ef + be, 0.0)   # [1, E]

    # --- scatter-add messages to destination nodes -----------------------
    # agg = msg @ Md^T with Md = dst half of the fused one-hot; the NT
    # dot_general keeps the "transpose" inside the MXU weight load, so no
    # [E,1] column input and no explicit A matrix are needed.
    md = m_sd[:, E_PAD:]                                             # [N, E]
    agg = lax.dot_general(msg, md, _NT,
                          preferred_element_type=jnp.float32)        # [1, N]

    # node update MLP + per-node MLP(1,1) with sigmoid output activation
    unf = jnp.maximum(wn_h * nf + wn_a * agg + bn, 0.0)              # [1, N]
    y = jax.nn.sigmoid(wm * unf + bm)                                # [1, N]

    # --- per-graph sum readout -------------------------------------------
    # Rg[g, v] = 1 iff graph_id[v] == g (padded nodes: graph_id == -1).
    # Re-generate the (128,128) sublane iota here instead of keeping v_sub
    # alive (iota regen is ~1 VALU op/vreg; holding v_sub would push the peak
    # live set past 64 vregs together with m_sd).
    g_sub = lax.broadcasted_iota(jnp.int32, (G_PAD, N_PAD), 0)
    rg = (g_sub == gid_row_ref[...]).astype(jnp.float32)             # [G, N]
    rd = lax.dot_general(y, rg, _NT,
                         preferred_element_type=jnp.float32)         # [1, G]

    # final sigmoid, lane-dense [1, G_PAD] output
    out_ref[...] = jax.nn.sigmoid(rd)


_COST = pl.CostEstimate(
    # three MXU dots (M=1): K=128 with N = 2E, N, G  ... plus compare+cast work
    flops=2 * 128 * (2 * E_PAD + N_PAD + G_PAD)
    + 2 * (N_PAD * 2 * E_PAD + G_PAD * N_PAD),
    # two 128-lane sigmoids -> exp + reciprocal per lane
    transcendentals=4 * 128,
    bytes_accessed=(16 + 2 * E_PAD + N_PAD + N_PAD + E_PAD + G_PAD) * 4,
)


def _gmodule_call(p, sd_row, gid_row, nf_row, ef_row):
    return pl.pallas_call(
        gmodule_kernel,
        out_shape=jax.ShapeDtypeStruct((1, G_PAD), jnp.float32),
        in_specs=[pl.BlockSpec(memory_space=pltpu.MemorySpace.SMEM)]
        + [pl.BlockSpec(memory_space=pltpu.MemorySpace.VMEM)] * 4,
        out_specs=pl.BlockSpec(memory_space=pltpu.MemorySpace.VMEM),
        cost_estimate=_COST,
    )(p, sd_row, gid_row, nf_row, ef_row)


def prepare_graph(src, dst, graph_id, ef, num_nodes, num_graphs):
    """One-time padding of the (loop-invariant) graph structure + edge features.

    Returns (sd_row [1, 2*E_PAD] i32, gid_row [1, N_PAD] i32, ef_row [1, E_PAD] f32).
    Hoist this out of the IterGNN iteration loop; only node features change
    per iteration.
    """
    N = int(num_nodes)
    E = int(src.shape[0])
    G = int(num_graphs)
    assert N <= N_PAD, f"N={N} exceeds N_PAD={N_PAD}"
    assert E <= E_PAD, f"E={E} exceeds E_PAD={E_PAD}"
    assert G <= G_PAD, f"num_graphs={G} exceeds G_PAD={G_PAD}"
    # One-time index validation: out-of-range indices would otherwise be
    # silently dropped by the in-kernel one-hots.
    if E > 0:
        assert int(jnp.min(src)) >= 0 and int(jnp.max(src)) < N, "src index out of range"
        assert int(jnp.min(dst)) >= 0 and int(jnp.max(dst)) < N, "dst index out of range"
    if N > 0:
        assert int(jnp.min(graph_id)) >= 0 and int(jnp.max(graph_id)) < G, (
            "graph_id out of range")

    src_p = jnp.pad(src.astype(jnp.int32), (0, E_PAD - E), constant_values=-1)
    dst_p = jnp.pad(dst.astype(jnp.int32), (0, E_PAD - E), constant_values=-1)
    sd_row = jnp.concatenate([src_p, dst_p]).reshape(1, 2 * E_PAD)
    gid_row = jnp.pad(graph_id.astype(jnp.int32), (0, N_PAD - N),
                      constant_values=-1).reshape(1, N_PAD)
    ef_row = jnp.pad(ef[:, 0].astype(jnp.float32), (0, E_PAD - E)).reshape(1, E_PAD)
    return sd_row, gid_row, ef_row


@functools.partial(jax.jit, static_argnames=("num_graphs",))
def gmodule_forward(params, sd_row, gid_row, ef_row, nf, num_graphs):
    """Per-iteration path: params f32[9], pre-padded structure rows, nf f32[N,1]."""
    N = nf.shape[0]
    assert N <= N_PAD, f"N={N} exceeds N_PAD={N_PAD}"
    p = jnp.pad(params.astype(jnp.float32), (0, 16 - params.shape[0]))
    nf_row = jnp.pad(nf[:, 0].astype(jnp.float32), (0, N_PAD - N)).reshape(1, N_PAD)
    out = _gmodule_call(p, sd_row, gid_row, nf_row, ef_row)
    return out[0, :num_graphs].reshape(num_graphs, 1)


def gmodule_ref(params, src, dst, graph_id, nf, ef, num_graphs):
    """Pure-JAX reference of the same forward pass."""
    we_s, we_d, we_f, be, wn_h, wn_a, bn, wm, bm = [params[i] for i in range(9)]
    hs = nf[src, 0]
    hd = nf[dst, 0]
    e = ef[:, 0]
    msg = jnp.maximum(we_s * hs + we_d * hd + we_f * e + be, 0.0)
    agg = jnp.zeros((nf.shape[0],), jnp.float32).at[dst].add(msg)
    unf = jnp.maximum(wn_h * nf[:, 0] + wn_a * agg + bn, 0.0)
    y = jax.nn.sigmoid(wm * unf + bm)
    rd = jnp.zeros((num_graphs,), jnp.float32).at[graph_id].add(y)
    return jax.nn.sigmoid(rd).reshape(num_graphs, 1)


if __name__ == "__main__":
    key = jax.random.PRNGKey(0)
    k_nf, k_ef, k_w = jax.random.split(key, 3)

    # Small batched graph: 2 graphs x 8 nodes, each a bidirectional ring (16 edges/graph).
    num_graphs = 2
    nodes_per_graph = 8
    N = num_graphs * nodes_per_graph                      # 16 nodes
    src_list, dst_list, gid_list = [], [], []
    for g in range(num_graphs):
        base = g * nodes_per_graph
        for i in range(nodes_per_graph):
            j = (i + 1) % nodes_per_graph
            src_list += [base + i, base + j]
            dst_list += [base + j, base + i]
        gid_list += [g] * nodes_per_graph
    src = jnp.array(src_list, dtype=jnp.int32)            # [32]
    dst = jnp.array(dst_list, dtype=jnp.int32)            # [32]
    graph_id = jnp.array(gid_list, dtype=jnp.int32)       # [16]
    E = src.shape[0]

    nf = jax.random.normal(k_nf, (N, 1), jnp.float32)     # node features, dim 1
    ef = jax.random.normal(k_ef, (E, 1), jnp.float32)     # edge features, dim 1

    # 9 scalar params: edge-MLP (3 w + 1 b), node-MLP (2 w + 1 b), MLP(1,1) (1 w + 1 b).
    params = 0.5 * jax.random.normal(k_w, (9,), jnp.float32)

    # Structure padding is done ONCE (hoisted out of any IterGNN iteration loop).
    sd_row, gid_row, ef_row = prepare_graph(src, dst, graph_id, ef, N, num_graphs)

    out = gmodule_forward(params, sd_row, gid_row, ef_row, nf, num_graphs)
    out = jax.block_until_ready(out)

    ref = gmodule_ref(params, src, dst, graph_id, nf, ef, num_graphs)
    assert out.shape == (num_graphs, 1) and out.dtype == jnp.float32
    np.testing.assert_allclose(np.asarray(out), np.asarray(ref), rtol=1e-5, atol=1e-5)

    print("KERNEL_OK")
</pallas_src>

<mosaic_0001>
module attributes {stable_mosaic.version = 11 : i64} {
  func.func @gmodule_kernel(%arg0: memref<16xf32, #tpu.memory_space<smem>>, %arg1: memref<1x256xi32, #tpu.memory_space<vmem>>, %arg2: memref<1x128xi32, #tpu.memory_space<vmem>>, %arg3: memref<1x128xf32, #tpu.memory_space<vmem>>, %arg4: memref<1x128xf32, #tpu.memory_space<vmem>>, %arg5: memref<1x128xf32, #tpu.memory_space<vmem>>) attributes {dimension_semantics = [], scalar_prefetch = 0 : i64, scratch_operands = 0 : i64, tpu.core_type = #tpu.core_type<tc>} {
    %c0 = arith.constant 0 : index
    %0 = memref.load %arg0[%c0] : memref<16xf32, #tpu.memory_space<smem>>
    %c1 = arith.constant 1 : index
    %1 = memref.load %arg0[%c1] : memref<16xf32, #tpu.memory_space<smem>>
    %c2 = arith.constant 2 : index
    %2 = memref.load %arg0[%c2] : memref<16xf32, #tpu.memory_space<smem>>
    %c3 = arith.constant 3 : index
    %3 = memref.load %arg0[%c3] : memref<16xf32, #tpu.memory_space<smem>>
    %c4 = arith.constant 4 : index
    %4 = memref.load %arg0[%c4] : memref<16xf32, #tpu.memory_space<smem>>
    %c5 = arith.constant 5 : index
    %5 = memref.load %arg0[%c5] : memref<16xf32, #tpu.memory_space<smem>>
    %c6 = arith.constant 6 : index
    %6 = memref.load %arg0[%c6] : memref<16xf32, #tpu.memory_space<smem>>
    %c7 = arith.constant 7 : index
    %7 = memref.load %arg0[%c7] : memref<16xf32, #tpu.memory_space<smem>>
    %c8 = arith.constant 8 : index
    %8 = memref.load %arg0[%c8] : memref<16xf32, #tpu.memory_space<smem>>
    %c0_0 = arith.constant 0 : index
    %c0_1 = arith.constant 0 : index
    %9 = vector.load %arg3[%c0_0, %c0_1] : memref<1x128xf32, #tpu.memory_space<vmem>>, vector<1x128xf32>
    %c0_2 = arith.constant 0 : index
    %c0_3 = arith.constant 0 : index
    %10 = vector.load %arg4[%c0_2, %c0_3] : memref<1x128xf32, #tpu.memory_space<vmem>>, vector<1x128xf32>
    %11 = tpu.iota {dimensions = array<i32: 0>} : vector<128x256xi32>
    %c0_4 = arith.constant 0 : index
    %c0_5 = arith.constant 0 : index
    %12 = vector.load %arg1[%c0_4, %c0_5] : memref<1x256xi32, #tpu.memory_space<vmem>>, vector<1x256xi32>
    %13 = vector.broadcast %12 : vector<1x256xi32> to vector<128x256xi32>
    %14 = arith.cmpi eq, %11, %13 : vector<128x256xi32>
    %15 = arith.extui %14 : vector<128x256xi1> to vector<128x256xi32>
    %16 = arith.sitofp %15 : vector<128x256xi32> to vector<128x256xf32>
    %cst = arith.constant dense<0.000000e+00> : vector<1x256xf32>
    %17 = tpu.matmul %9, %16, %cst {dimension_numbers = #tpu.dot_dimension_numbers<[1], [0], [0], [1], [0, 0, 1, 1], [], []>} : vector<1x128xf32>, vector<128x256xf32>, vector<1x256xf32> -> vector<1x256xf32>
    %18 = vector.extract_strided_slice %17 {offsets = [0, 0], sizes = [1, 128], strides = [1, 1]} : vector<1x256xf32> to vector<1x128xf32>
    %19 = vector.extract_strided_slice %17 {offsets = [0, 128], sizes = [1, 128], strides = [1, 1]} : vector<1x256xf32> to vector<1x128xf32>
    %20 = vector.broadcast %0 : f32 to vector<1x128xf32>
    %21 = arith.mulf %20, %18 : vector<1x128xf32>
    %22 = vector.broadcast %1 : f32 to vector<1x128xf32>
    %23 = arith.mulf %22, %19 : vector<1x128xf32>
    %24 = arith.addf %21, %23 : vector<1x128xf32>
    %25 = vector.broadcast %2 : f32 to vector<1x128xf32>
    %26 = arith.mulf %25, %10 : vector<1x128xf32>
    %27 = arith.addf %24, %26 : vector<1x128xf32>
    %28 = vector.broadcast %3 : f32 to vector<1x128xf32>
    %29 = arith.addf %27, %28 : vector<1x128xf32>
    %cst_6 = arith.constant 0.000000e+00 : f32
    %30 = vector.broadcast %cst_6 : f32 to vector<1x128xf32>
    %31 = arith.maximumf %29, %30 : vector<1x128xf32>
    %32 = vector.extract_strided_slice %16 {offsets = [0, 128], sizes = [128, 128], strides = [1, 1]} : vector<128x256xf32> to vector<128x128xf32>
    %cst_7 = arith.constant dense<0.000000e+00> : vector<1x128xf32>
    %33 = tpu.matmul %31, %32, %cst_7 {dimension_numbers = #tpu.dot_dimension_numbers<[1], [1], [0], [0], [0, 0, 1, 0], [], []>} : vector<1x128xf32>, vector<128x128xf32>, vector<1x128xf32> -> vector<1x128xf32>
    %34 = vector.broadcast %4 : f32 to vector<1x128xf32>
    %35 = arith.mulf %34, %9 : vector<1x128xf32>
    %36 = vector.broadcast %5 : f32 to vector<1x128xf32>
    %37 = arith.mulf %36, %33 : vector<1x128xf32>
    %38 = arith.addf %35, %37 : vector<1x128xf32>
    %39 = vector.broadcast %6 : f32 to vector<1x128xf32>
    %40 = arith.addf %38, %39 : vector<1x128xf32>
    %cst_8 = arith.constant 0.000000e+00 : f32
    %41 = vector.broadcast %cst_8 : f32 to vector<1x128xf32>
    %42 = arith.maximumf %40, %41 : vector<1x128xf32>
    %43 = vector.broadcast %7 : f32 to vector<1x128xf32>
    %44 = arith.mulf %43, %42 : vector<1x128xf32>
    %45 = vector.broadcast %8 : f32 to vector<1x128xf32>
    %46 = arith.addf %44, %45 : vector<1x128xf32>
    %47 = arith.negf %46 : vector<1x128xf32>
    %48 = math.exp %47 : vector<1x128xf32>
    %cst_9 = arith.constant 1.000000e+00 : f32
    %49 = vector.broadcast %cst_9 : f32 to vector<1x128xf32>
    %50 = arith.addf %49, %48 : vector<1x128xf32>
    %51 = arith.divf %49, %50 : vector<1x128xf32>
    %52 = tpu.iota {dimensions = array<i32: 0>} : vector<128x128xi32>
    %c0_10 = arith.constant 0 : index
    %c0_11 = arith.constant 0 : index
    %53 = vector.load %arg2[%c0_10, %c0_11] : memref<1x128xi32, #tpu.memory_space<vmem>>, vector<1x128xi32>
    %54 = vector.broadcast %53 : vector<1x128xi32> to vector<128x128xi32>
    %55 = arith.cmpi eq, %52, %54 : vector<128x128xi32>
    %56 = arith.extui %55 : vector<128x128xi1> to vector<128x128xi32>
    %57 = arith.sitofp %56 : vector<128x128xi32> to vector<128x128xf32>
    %cst_12 = arith.constant dense<0.000000e+00> : vector<1x128xf32>
    %58 = tpu.matmul %51, %57, %cst_12 {dimension_numbers = #tpu.dot_dimension_numbers<[1], [1], [0], [0], [0, 0, 1, 0], [], []>} : vector<1x128xf32>, vector<128x128xf32>, vector<1x128xf32> -> vector<1x128xf32>
    %59 = arith.negf %58 : vector<1x128xf32>
    %60 = math.exp %59 : vector<1x128xf32>
    %cst_13 = arith.constant 1.000000e+00 : f32
    %61 = vector.broadcast %cst_13 : f32 to vector<1x128xf32>
    %62 = arith.addf %61, %60 : vector<1x128xf32>
    %63 = arith.divf %61, %62 : vector<1x128xf32>
    %c0_14 = arith.constant 0 : index
    %c0_15 = arith.constant 0 : index
    %64 = vector.load %arg5[%c0_14, %c0_15] : memref<1x128xf32, #tpu.memory_space<vmem>>, vector<1x128xf32>
    tpu.vector_store %arg5[%c0_14, %c0_15], %63 {strides = array<i32>} : memref<1x128xf32, #tpu.memory_space<vmem>>, vector<1x128xf32>,
    return
  }
}

</mosaic_0001>

<llo_original>
// kernel: gmodule_forward.1
$region0: #{gmodule_forward.1}
  #allocation0 [shape = 'u32[]', space=smem, size = 0x4, offset = 0x4, fixed_abs, tag = 'smem constant byte address 0x4 - core index']
  #allocation1 [shape = 'u32[144,128]{1,0:T(1,128)}', space=vmem, size = 0x12000, scoped, tag = 'internal scratch']
  %s0 = inlined_call_operand.vmem [shape: f32[16], index: 0, kind: input, shape index: {}]
  %s1 = inlined_call_operand.vmem [shape: s32[1,256], index: 1, kind: input, shape index: {}]
  %s2 = inlined_call_operand.vmem [shape: s32[1,128], index: 2, kind: input, shape index: {}]
  %s3 = inlined_call_operand.vmem [shape: f32[1,128], index: 3, kind: input, shape index: {}]
  %s4 = inlined_call_operand.vmem [shape: f32[1,128], index: 4, kind: input, shape index: {}]
  %s5 = inlined_call_operand.vmem [shape: f32[1,128], index: 5, kind: output, shape index: {}]
  %s6 = sld [smem:[#allocation0]]
  $region34: #{gmodule_forward.1} parent=0
    _
  %s8 = ssub.s32 1, %s6
  %s9 = scalar_select 0, %s8, %s6
  $region1: #{gmodule_forward.1} parent=0
    #allocation2 [shape = 'u8[512]{0}', space=smem, size = 0x200, scoped, tag = 'input window, operand 0, single buffered']
    #allocation3 [shape = 's32[1]{0}', space=sflag, size = 0x4, scoped, tag = 'scoped memory for gmodule_forward.1']
    %10 = vsyncpa [#allocation3], 0
    // Predicated region
    $region2: #{gmodule_forward.1} parent=1 // pred_check
      _
    $region3: #{gmodule_forward.1} parent=1 // pred_check_branch
      %12 = sbr.rel (0) target = $region5
    $region4: #{gmodule_forward.1} parent=1 // pred_region
      %s14 = ssub.s32 16, 16
      %15 = vsyncadd [#allocation3], %s14
      %s17 = sshll.u32 %s0, 4
      %s18 = int_to_ptr.vmem [resolvable:$true] %s17
      %20 = dma.vmem_to_smem %s18, 16, [#allocation2], [#allocation3]
    $region5: #{gmodule_forward.1} parent=1 // pred_fallthru
      _
    // Predicated region
    $region6: #{gmodule_forward.1} parent=1 // pred_check
      _
    $region7: #{gmodule_forward.1} parent=1 // pred_check_branch
      %22 = sbr.rel (0) target = $region9
    $region8: #{gmodule_forward.1} parent=1 // pred_region
      _
    $region9: #{gmodule_forward.1} parent=1 // pred_fallthru
      _
    // Predicated region
    $region10: #{gmodule_forward.1} parent=1 // pred_check
      _
    $region11: #{gmodule_forward.1} parent=1 // pred_check_branch
      %24 = sbr.rel (0) target = $region13
    $region12: #{gmodule_forward.1} parent=1 // pred_region
      _
    $region13: #{gmodule_forward.1} parent=1 // pred_fallthru
      _
    // Predicated region
    $region14: #{gmodule_forward.1} parent=1 // pred_check
      _
    $region15: #{gmodule_forward.1} parent=1 // pred_check_branch
      %26 = sbr.rel (0) target = $region17
    $region16: #{gmodule_forward.1} parent=1 // pred_region
      _
    $region17: #{gmodule_forward.1} parent=1 // pred_fallthru
      _
    // Predicated region
    $region18: #{gmodule_forward.1} parent=1 // pred_check
      _
    $region19: #{gmodule_forward.1} parent=1 // pred_check_branch
      %28 = sbr.rel (0) target = $region21
    $region20: #{gmodule_forward.1} parent=1 // pred_region
      _
    $region21: #{gmodule_forward.1} parent=1 // pred_fallthru
      _
    // Predicated region
    $region22: #{gmodule_forward.1} parent=1 // pred_check
      _
    $region23: #{gmodule_forward.1} parent=1 // pred_check_branch
      %30 = sbr.rel (0) target = $region25
    $region24: #{gmodule_forward.1} parent=1 // pred_region
      %31 = dma.done [#allocation3], 16
    $region25: #{gmodule_forward.1} parent=1 // pred_fallthru
      _
    %32 = sfence
    %s33 = sld [smem:[#allocation2]]
    %s34 = sld [smem:[#allocation2 + $0x1]]
    %s35 = sld [smem:[#allocation2 + $0x2]]
    %s36 = sld [smem:[#allocation2 + $0x3]]
    %s37 = sld [smem:[#allocation2 + $0x4]]
    %s38 = sld [smem:[#allocation2 + $0x5]]
    %s39 = sld [smem:[#allocation2 + $0x6]]
    %s40 = sld [smem:[#allocation2 + $0x7]]
    %s41 = sld [smem:[#allocation2 + $0x8]]
    %v42 = vld [vmem:[%s3] sm:$0x1]
    %v43 = vld [vmem:[%s4] sm:$0x1]
    %v44 = vlaneseq
    %v45 = vshrl.u32 %v44, 7
    %v46 = vadd.s32 %v45, 8
    %v47 = vadd.s32 %v45, 16
    %v48 = vadd.s32 %v45, 24
    %v49 = vadd.s32 %v45, 32
    %v50 = vadd.s32 %v45, 40
    %v51 = vadd.s32 %v45, 48
    %v52 = vadd.s32 %v45, 56
    %v53 = vadd.s32 %v45, 64
    %v54 = vadd.s32 %v45, 72
    %v55 = vadd.s32 %v45, 80
    %v56 = vadd.s32 %v45, 88
    %v57 = vadd.s32 %v45, 96
    %v58 = vadd.s32 %v45, 104
    %v59 = vadd.s32 %v45, 112
    %v60 = vadd.s32 %v45, 120
    %v61 = vld [vmem:[%s1] sm:$0x3]
    %v62 = vlaneseq
    %v63 = vshrl.u32 %v62, 7
    %v64 = vsub.s32 0, %v63
    %v65 = vrot.slane %v61, %v64
    %v66 = vlaneseq
    %v67 = vshrl.u32 %v66, 7
    %v68 = vsub.s32 1, %v67
    %v69 = vrot.slane %v61, %v68
    %vm70 = vcmp.eq.s32.totalorder %v45, %v65
    %vm71 = vcmp.eq.s32.totalorder %v45, %v69
    %vm72 = vcmp.eq.s32.totalorder %v46, %v65
    %vm73 = vcmp.eq.s32.totalorder %v46, %v69
    %vm74 = vcmp.eq.s32.totalorder %v47, %v65
    %vm75 = vcmp.eq.s32.totalorder %v47, %v69
    %vm76 = vcmp.eq.s32.totalorder %v48, %v65
    %vm77 = vcmp.eq.s32.totalorder %v48, %v69
    %vm78 = vcmp.eq.s32.totalorder %v49, %v65
    %vm79 = vcmp.eq.s32.totalorder %v49, %v69
    %vm80 = vcmp.eq.s32.totalorder %v50, %v65
    %vm81 = vcmp.eq.s32.totalorder %v50, %v69
    %vm82 = vcmp.eq.s32.totalorder %v51, %v65
    %vm83 = vcmp.eq.s32.totalorder %v51, %v69
    %vm84 = vcmp.eq.s32.totalorder %v52, %v65
    %vm85 = vcmp.eq.s32.totalorder %v52, %v69
    %vm86 = vcmp.eq.s32.totalorder %v53, %v65
    %vm87 = vcmp.eq.s32.totalorder %v53, %v69
    %vm88 = vcmp.eq.s32.totalorder %v54, %v65
    %vm89 = vcmp.eq.s32.totalorder %v54, %v69
    %vm90 = vcmp.eq.s32.totalorder %v55, %v65
    %vm91 = vcmp.eq.s32.totalorder %v55, %v69
    %vm92 = vcmp.eq.s32.totalorder %v56, %v65
    %vm93 = vcmp.eq.s32.totalorder %v56, %v69
    %vm94 = vcmp.eq.s32.totalorder %v57, %v65
    %vm95 = vcmp.eq.s32.totalorder %v57, %v69
    %vm96 = vcmp.eq.s32.totalorder %v58, %v65
    %vm97 = vcmp.eq.s32.totalorder %v58, %v69
    %vm98 = vcmp.eq.s32.totalorder %v59, %v65
    %vm99 = vcmp.eq.s32.totalorder %v59, %v69
    %vm100 = vcmp.eq.s32.totalorder %v60, %v65
    %vm101 = vcmp.eq.s32.totalorder %v60, %v69
    %v102 = vsel %vm70, 1, 0
    %v103 = vsel %vm71, 1, 0
    %v104 = vsel %vm72, 1, 0
    %v105 = vsel %vm73, 1, 0
    %v106 = vsel %vm74, 1, 0
    %v107 = vsel %vm75, 1, 0
    %v108 = vsel %vm76, 1, 0
    %v109 = vsel %vm77, 1, 0
    %v110 = vsel %vm78, 1, 0
    %v111 = vsel %vm79, 1, 0
    %v112 = vsel %vm80, 1, 0
    %v113 = vsel %vm81, 1, 0
    %v114 = vsel %vm82, 1, 0
    %v115 = vsel %vm83, 1, 0
    %v116 = vsel %vm84, 1, 0
    %v117 = vsel %vm85, 1, 0
    %v118 = vsel %vm86, 1, 0
    %v119 = vsel %vm87, 1, 0
    %v120 = vsel %vm88, 1, 0
    %v121 = vsel %vm89, 1, 0
    %v122 = vsel %vm90, 1, 0
    %v123 = vsel %vm91, 1, 0
    %v124 = vsel %vm92, 1, 0
    %v125 = vsel %vm93, 1, 0
    %v126 = vsel %vm94, 1, 0
    %v127 = vsel %vm95, 1, 0
    %v128 = vsel %vm96, 1, 0
    %v129 = vsel %vm97, 1, 0
    %v130 = vsel %vm98, 1, 0
    %v131 = vsel %vm99, 1, 0
    %v132 = vsel %vm100, 1, 0
    %v133 = vsel %vm101, 1, 0
    %v134 = vcvt.s32.f32 %v102
    %v135 = vcvt.s32.f32 %v103
    %v136 = vcvt.s32.f32 %v104
    %v137 = vcvt.s32.f32 %v105
    %v138 = vcvt.s32.f32 %v106
    %v139 = vcvt.s32.f32 %v107
    %v140 = vcvt.s32.f32 %v108
    %v141 = vcvt.s32.f32 %v109
    %v142 = vcvt.s32.f32 %v110
    %v143 = vcvt.s32.f32 %v111
    %v144 = vcvt.s32.f32 %v112
    %v145 = vcvt.s32.f32 %v113
    %v146 = vcvt.s32.f32 %v114
    %v147 = vcvt.s32.f32 %v115
    %v148 = vcvt.s32.f32 %v116
    %v149 = vcvt.s32.f32 %v117
    %v150 = vcvt.s32.f32 %v118
    %v151 = vcvt.s32.f32 %v119
    %v152 = vcvt.s32.f32 %v120
    %v153 = vcvt.s32.f32 %v121
    %v154 = vcvt.s32.f32 %v122
    %v155 = vcvt.s32.f32 %v123
    %v156 = vcvt.s32.f32 %v124
    %v157 = vcvt.s32.f32 %v125
    %v158 = vcvt.s32.f32 %v126
    %v159 = vcvt.s32.f32 %v127
    %v160 = vcvt.s32.f32 %v128
    %v161 = vcvt.s32.f32 %v129
    %v162 = vcvt.s32.f32 %v130
    %v163 = vcvt.s32.f32 %v131
    %v164 = vcvt.s32.f32 %v132
    %v165 = vcvt.s32.f32 %v133
    %166 = vmatprep.subr.mxu0 %v135
    %167 = vmatpush1.msra.mxu0 %v134
    %168 = vmatprep.subr.mxu0 %v137
    %169 = vmatpush1.msra.mxu0 %v136
    %170 = vmatprep.subr.mxu0 %v139
    %171 = vmatpush1.msra.mxu0 %v138
    %172 = vmatprep.subr.mxu0 %v141
    %173 = vmatpush1.msra.mxu0 %v140
    %174 = vmatprep.subr.mxu0 %v143
    %175 = vmatpush1.msra.mxu0 %v142
    %176 = vmatprep.subr.mxu0 %v145
    %177 = vmatpush1.msra.mxu0 %v144
    %178 = vmatprep.subr.mxu0 %v147
    %179 = vmatpush1.msra.mxu0 %v146
    %180 = vmatprep.subr.mxu0 %v149
    %181 = vmatpush1.msra.mxu0 %v148
    %182 = vmatprep.subr.mxu0 %v151
    %183 = vmatpush1.msra.mxu0 %v150
    %184 = vmatprep.subr.mxu0 %v153
    %185 = vmatpush1.msra.mxu0 %v152
    %186 = vmatprep.subr.mxu0 %v155
    %187 = vmatpush1.msra.mxu0 %v154
    %188 = vmatprep.subr.mxu0 %v157
    %189 = vmatpush1.msra.mxu0 %v156
    %190 = vmatprep.subr.mxu0 %v159
    %191 = vmatpush1.msra.mxu0 %v158
    %192 = vmatprep.subr.mxu0 %v161
    %193 = vmatpush1.msra.mxu0 %v160
    %194 = vmatprep.subr.mxu0 %v163
    %195 = vmatpush1.msra.mxu0 %v162
    %196 = vmatprep.subr.mxu0 %v165
    %197 = vmatpush1.msra.mxu0 %v164
    %198 = vmatprep.subr.mxu0 0.0
    %199 = vmatpush1.msra.mxu0 0.0
    %200 = vmatprep.subr.mxu0 0.0
    %201 = vmatpush1.msra.mxu0 0.0
    %202 = vmatprep.subr.mxu0 0.0
    %203 = vmatpush1.msra.mxu0 0.0
    %204 = vmatprep.subr.mxu0 0.0
    %205 = vmatpush1.msra.mxu0 0.0
    %206 = vmatprep.subr.mxu0 0.0
    %207 = vmatpush1.msra.mxu0 0.0
    %208 = vmatprep.subr.mxu0 0.0
    %209 = vmatpush1.msra.mxu0 0.0
    %210 = vmatprep.subr.mxu0 0.0
    %211 = vmatpush1.msra.mxu0 0.0
    %212 = vmatprep.subr.mxu0 0.0
    %213 = vmatpush1.msra.mxu0 0.0
    %214 = vmatprep.subr.mxu0 0.0
    %215 = vmatpush1.msra.mxu0 0.0
    %216 = vmatprep.subr.mxu0 0.0
    %217 = vmatpush1.msra.mxu0 0.0
    %218 = vmatprep.subr.mxu0 0.0
    %219 = vmatpush1.msra.mxu0 0.0
    %220 = vmatprep.subr.mxu0 0.0
    %221 = vmatpush1.msra.mxu0 0.0
    %222 = vmatprep.subr.mxu0 0.0
    %223 = vmatpush1.msra.mxu0 0.0
    %224 = vmatprep.subr.mxu0 0.0
    %225 = vmatpush1.msra.mxu0 0.0
    %226 = vmatprep.subr.mxu0 0.0
    %227 = vmatpush1.msra.mxu0 0.0
    %228 = vmatprep.subr.mxu0 0.0
    %229 = vmatpush1.msra.mxu0 0.0
    %230 = vmatprep.mubr.f32.mxu0 0.0
    %231 = vmatmul.mubr.f32.gmra.mrb[0].mxu0 %v42
    %v232 = vpop.f32.mrb[0].mxu0
    %v233 = vadd.f32 0.0, %v232
    %v234 = vpop.f32.mrb[0].mxu0
    %v235 = vadd.f32 0.0, %v234
    %236 = vdwg.mxu0
    %v237 = vstv %s33
    %v238 = vmul.f32 %v237, %v233
    %v239 = vstv %s34
    %v240 = vmul.f32 %v239, %v235
    %v241 = vadd.f32 %v238, %v240
    %v242 = vstv %s35
    %v243 = vmul.f32 %v242, %v43
    %v244 = vadd.f32 %v241, %v243
    %v245 = vstv %s36
    %v246 = vadd.f32 %v244, %v245
    %v247 = vmax.f32 %v246, 0.0
    %248 = vmatprep.subr.mxu0 0.0
    %249 = vmatpush1.xpose.msra.mxu0 %v135
    %250 = vmatprep.subr.mxu0 0.0
    %251 = vmatpush1.xpose.msra.mxu0 %v137
    %252 = vmatprep.subr.mxu0 0.0
    %253 = vmatpush1.xpose.msra.mxu0 %v139
    %254 = vmatprep.subr.mxu0 0.0
    %255 = vmatpush1.xpose.msra.mxu0 %v141
    %256 = vmatprep.subr.mxu0 0.0
    %257 = vmatpush1.xpose.msra.mxu0 %v143
    %258 = vmatprep.subr.mxu0 0.0
    %259 = vmatpush1.xpose.msra.mxu0 %v145
    %260 = vmatprep.subr.mxu0 0.0
    %261 = vmatpush1.xpose.msra.mxu0 %v147
    %262 = vmatprep.subr.mxu0 0.0
    %263 = vmatpush1.xpose.msra.mxu0 %v149
    %264 = vmatprep.subr.mxu0 0.0
    %265 = vmatpush1.xpose.msra.mxu0 %v151
    %266 = vmatprep.subr.mxu0 0.0
    %267 = vmatpush1.xpose.msra.mxu0 %v153
    %268 = vmatprep.subr.mxu0 0.0
    %269 = vmatpush1.xpose.msra.mxu0 %v155
    %270 = vmatprep.subr.mxu0 0.0
    %271 = vmatpush1.xpose.msra.mxu0 %v157
    %272 = vmatprep.subr.mxu0 0.0
    %273 = vmatpush1.xpose.msra.mxu0 %v159
    %274 = vmatprep.subr.mxu0 0.0
    %275 = vmatpush1.xpose.msra.mxu0 %v161
    %276 = vmatprep.subr.mxu0 0.0
    %277 = vmatpush1.xpose.msra.mxu0 %v163
    %278 = vmatprep.subr.mxu0 0.0
    %279 = vmatpush1.xpose.msra.mxu0 %v165
    %280 = vmatprep.subr.mxu0 0.0
    %281 = vmatpush1.xpose.msra.mxu0 0.0
    %282 = vmatprep.subr.mxu0 0.0
    %283 = vmatpush1.xpose.msra.mxu0 0.0
    %284 = vmatprep.subr.mxu0 0.0
    %285 = vmatpush1.xpose.msra.mxu0 0.0
    %286 = vmatprep.subr.mxu0 0.0
    %287 = vmatpush1.xpose.msra.mxu0 0.0
    %288 = vmatprep.subr.mxu0 0.0
    %289 = vmatpush1.xpose.msra.mxu0 0.0
    %290 = vmatprep.subr.mxu0 0.0
    %291 = vmatpush1.xpose.msra.mxu0 0.0
    %292 = vmatprep.subr.mxu0 0.0
    %293 = vmatpush1.xpose.msra.mxu0 0.0
    %294 = vmatprep.subr.mxu0 0.0
    %295 = vmatpush1.xpose.msra.mxu0 0.0
    %296 = vmatprep.subr.mxu0 0.0
    %297 = vmatpush1.xpose.msra.mxu0 0.0
    %298 = vmatprep.subr.mxu0 0.0
    %299 = vmatpush1.xpose.msra.mxu0 0.0
    %300 = vmatprep.subr.mxu0 0.0
    %301 = vmatpush1.xpose.msra.mxu0 0.0
    %302 = vmatprep.subr.mxu0 0.0
    %303 = vmatpush1.xpose.msra.mxu0 0.0
    %304 = vmatprep.subr.mxu0 0.0
    %305 = vmatpush1.xpose.msra.mxu0 0.0
    %306 = vmatprep.subr.mxu0 0.0
    %307 = vmatpush1.xpose.msra.mxu0 0.0
    %308 = vmatprep.subr.mxu0 0.0
    %309 = vmatpush1.xpose.msra.mxu0 0.0
    %310 = vmatprep.subr.mxu0 0.0
    %311 = vmatpush1.xpose.msra.mxu0 0.0
    %312 = vmatprep.mubr.f32.mxu0 0.0
    %313 = vmatmul.mubr.f32.gmra.mrb[0].mxu0 %v247
    %v314 = vpop.f32.mrb[0].mxu0
    %v315 = vadd.f32 0.0, %v314
    %v316 = vpop.f32.mrb[0].mxu0
    %317 = vdwg.mxu0
    %v318 = vstv %s37
    %v319 = vmul.f32 %v318, %v42
    %v320 = vstv %s38
    %v321 = vmul.f32 %v320, %v315
    %v322 = vadd.f32 %v319, %v321
    %v323 = vstv %s39
    %v324 = vadd.f32 %v322, %v323
    %v325 = vmax.f32 %v324, 0.0
    %v326 = vstv %s40
    %v327 = vmul.f32 %v326, %v325
    %v328 = vstv %s41
    %v329 = vadd.f32 %v327, %v328
    %v330 = vxor.u32 %v329, 2147483648
    %v331 = vmul.f32 %v330, 1.442695
    %v332 = vpow.pop %v331
    %v333 = vadd.f32 %v332, 1.0
    %v334 = vrcp.pop %v333
    %v335 = vmul.f32 1.0, %v334
    %v336 = vld [vmem:[%s2] sm:$0x1]
    %v337 = vlaneseq
    %v338 = vshrl.u32 %v337, 7
    %v339 = vsub.s32 0, %v338
    %v340 = vrot.slane %v336, %v339
    %vm341 = vcmp.eq.s32.totalorder %v45, %v340
    %vm342 = vcmp.eq.s32.totalorder %v46, %v340
    %vm343 = vcmp.eq.s32.totalorder %v47, %v340
    %vm344 = vcmp.eq.s32.totalorder %v48, %v340
    %vm345 = vcmp.eq.s32.totalorder %v49, %v340
    %vm346 = vcmp.eq.s32.totalorder %v50, %v340
    %vm347 = vcmp.eq.s32.totalorder %v51, %v340
    %vm348 = vcmp.eq.s32.totalorder %v52, %v340
    %vm349 = vcmp.eq.s32.totalorder %v53, %v340
    %vm350 = vcmp.eq.s32.totalorder %v54, %v340
    %vm351 = vcmp.eq.s32.totalorder %v55, %v340
    %vm352 = vcmp.eq.s32.totalorder %v56, %v340
    %vm353 = vcmp.eq.s32.totalorder %v57, %v340
    %vm354 = vcmp.eq.s32.totalorder %v58, %v340
    %vm355 = vcmp.eq.s32.totalorder %v59, %v340
    %vm356 = vcmp.eq.s32.totalorder %v60, %v340
    %v357 = vsel %vm341, 1, 0
    %v358 = vsel %vm342, 1, 0
    %v359 = vsel %vm343, 1, 0
    %v360 = vsel %vm344, 1, 0
    %v361 = vsel %vm345, 1, 0
    %v362 = vsel %vm346, 1, 0
    %v363 = vsel %vm347, 1, 0
    %v364 = vsel %vm348, 1, 0
    %v365 = vsel %vm349, 1, 0
    %v366 = vsel %vm350, 1, 0
    %v367 = vsel %vm351, 1, 0
    %v368 = vsel %vm352, 1, 0
    %v369 = vsel %vm353, 1, 0
    %v370 = vsel %vm354, 1, 0
    %v371 = vsel %vm355, 1, 0
    %v372 = vsel %vm356, 1, 0
    %v373 = vcvt.s32.f32 %v357
    %v374 = vcvt.s32.f32 %v358
    %v375 = vcvt.s32.f32 %v359
    %v376 = vcvt.s32.f32 %v360
    %v377 = vcvt.s32.f32 %v361
    %v378 = vcvt.s32.f32 %v362
    %v379 = vcvt.s32.f32 %v363
    %v380 = vcvt.s32.f32 %v364
    %v381 = vcvt.s32.f32 %v365
    %v382 = vcvt.s32.f32 %v366
    %v383 = vcvt.s32.f32 %v367
    %v384 = vcvt.s32.f32 %v368
    %v385 = vcvt.s32.f32 %v369
    %v386 = vcvt.s32.f32 %v370
    %v387 = vcvt.s32.f32 %v371
    %v388 = vcvt.s32.f32 %v372
    %389 = vmatprep.subr.mxu0 0.0
    %390 = vmatpush1.xpose.msra.mxu0 %v373
    %391 = vmatprep.subr.mxu0 0.0
    %392 = vmatpush1.xpose.msra.mxu0 %v374
    %393 = vmatprep.subr.mxu0 0.0
    %394 = vmatpush1.xpose.msra.mxu0 %v375
    %395 = vmatprep.subr.mxu0 0.0
    %396 = vmatpush1.xpose.msra.mxu0 %v376
    %397 = vmatprep.subr.mxu0 0.0
    %398 = vmatpush1.xpose.msra.mxu0 %v377
    %399 = vmatprep.subr.mxu0 0.0
    %400 = vmatpush1.xpose.msra.mxu0 %v378
    %401 = vmatprep.subr.mxu0 0.0
    %402 = vmatpush1.xpose.msra.mxu0 %v379
    %403 = vmatprep.subr.mxu0 0.0
    %404 = vmatpush1.xpose.msra.mxu0 %v380
    %405 = vmatprep.subr.mxu0 0.0
    %406 = vmatpush1.xpose.msra.mxu0 %v381
    %407 = vmatprep.subr.mxu0 0.0
    %408 = vmatpush1.xpose.msra.mxu0 %v382
    %409 = vmatprep.subr.mxu0 0.0
    %410 = vmatpush1.xpose.msra.mxu0 %v383
    %411 = vmatprep.subr.mxu0 0.0
    %412 = vmatpush1.xpose.msra.mxu0 %v384
    %413 = vmatprep.subr.mxu0 0.0
    %414 = vmatpush1.xpose.msra.mxu0 %v385
    %415 = vmatprep.subr.mxu0 0.0
    %416 = vmatpush1.xpose.msra.mxu0 %v386
    %417 = vmatprep.subr.mxu0 0.0
    %418 = vmatpush1.xpose.msra.mxu0 %v387
    %419 = vmatprep.subr.mxu0 0.0
    %420 = vmatpush1.xpose.msra.mxu0 %v388
    %421 = vmatprep.subr.mxu0 0.0
    %422 = vmatpush1.xpose.msra.mxu0 0.0
    %423 = vmatprep.subr.mxu0 0.0
    %424 = vmatpush1.xpose.msra.mxu0 0.0
    %425 = vmatprep.subr.mxu0 0.0
    %426 = vmatpush1.xpose.msra.mxu0 0.0
    %427 = vmatprep.subr.mxu0 0.0
    %428 = vmatpush1.xpose.msra.mxu0 0.0
    %429 = vmatprep.subr.mxu0 0.0
    %430 = vmatpush1.xpose.msra.mxu0 0.0
    %431 = vmatprep.subr.mxu0 0.0
    %432 = vmatpush1.xpose.msra.mxu0 0.0
    %433 = vmatprep.subr.mxu0 0.0
    %434 = vmatpush1.xpose.msra.mxu0 0.0
    %435 = vmatprep.subr.mxu0 0.0
    %436 = vmatpush1.xpose.msra.mxu0 0.0
    %437 = vmatprep.subr.mxu0 0.0
    %438 = vmatpush1.xpose.msra.mxu0 0.0
    %439 = vmatprep.subr.mxu0 0.0
    %440 = vmatpush1.xpose.msra.mxu0 0.0
    %441 = vmatprep.subr.mxu0 0.0
    %442 = vmatpush1.xpose.msra.mxu0 0.0
    %443 = vmatprep.subr.mxu0 0.0
    %444 = vmatpush1.xpose.msra.mxu0 0.0
    %445 = vmatprep.subr.mxu0 0.0
    %446 = vmatpush1.xpose.msra.mxu0 0.0
    %447 = vmatprep.subr.mxu0 0.0
    %448 = vmatpush1.xpose.msra.mxu0 0.0
    %449 = vmatprep.subr.mxu0 0.0
    %450 = vmatpush1.xpose.msra.mxu0 0.0
    %451 = vmatprep.subr.mxu0 0.0
    %452 = vmatpush1.xpose.msra.mxu0 0.0
    %453 = vmatprep.mubr.f32.mxu0 0.0
    %454 = vmatmul.mubr.f32.gmra.mrb[0].mxu0 %v335
    %v455 = vpop.f32.mrb[0].mxu0
    %v456 = vadd.f32 0.0, %v455
    %v457 = vpop.f32.mrb[0].mxu0
    %458 = vdwg.mxu0
    %v459 = vxor.u32 %v456, 2147483648
    %v460 = vmul.f32 %v459, 1.442695
    %v461 = vpow.pop %v460
    %v462 = vadd.f32 %v461, 1.0
    %v463 = vrcp.pop %v462
    %v464 = vmul.f32 1.0, %v463
    %465 = vst [vmem:[%s5] sm:$0x1] %v464
    // Predicated region
    $region26: #{gmodule_forward.1} parent=1 // pred_check
      _
    $region27: #{gmodule_forward.1} parent=1 // pred_check_branch
      %467 = sbr.rel (0) target = $region29
    $region28: #{gmodule_forward.1} parent=1 // pred_region
      _
    $region29: #{gmodule_forward.1} parent=1 // pred_fallthru
      _
    // Predicated region
    $region30: #{gmodule_forward.1} parent=1 // pred_check
      _
    $region31: #{gmodule_forward.1} parent=1 // pred_check_branch
      %469 = sbr.rel (0) target = $region33
    $region32: #{gmodule_forward.1} parent=1 // pred_region
      _
    $region33: #{gmodule_forward.1} parent=1 // pred_fallthru
      _
    %470 = vsyncpa [#allocation3], 1

</llo_original>
